<compile_context>
chip_gen: v7x
topology: tpu7x:2x2x1
jax: 0.10.0
libtpu: 0.0.40
codegen_flags: <defaults>
</compile_context>

<pallas_src>
import math

import jax
import jax.numpy as jnp
from jax.experimental import pallas as pl
from jax.experimental.pallas import tpu as pltpu


def _round_up(x, m):
    return ((x + m - 1) // m) * m


# ----------------------------------------------------------------------------
# Fused kernel: transform (dense + gelu + LayerNorm) into VMEM scratch at
# j == 0, then one (tm, tv) decoder matmul tile for every j.
#
# CORRECTNESS NOTE: the t_scratch caching is only valid because the vocab axis
# j is the innermost ("arbitrary") grid axis and the row axis i is the only
# "parallel" one.  Do not reorder the grid or mark j parallel.
# ----------------------------------------------------------------------------
def fused_head_kernel(x_ref, wd_ref, bd_ref, gamma_ref, beta_ref,
                      we_ref, bv_ref, o_ref, t_scratch):
    @pl.when(pl.program_id(1) == 0)
    def _():
        x = x_ref[...].astype(wd_ref.dtype)               # (tm, H), MXU dtype
        h = jnp.dot(x, wd_ref[...], preferred_element_type=jnp.float32)
        h = h + bd_ref[...]                               # f32 from here on
        # erf-based gelu
        inv_sqrt2 = jnp.float32(1.0 / math.sqrt(2.0))
        h = h * 0.5 * (1.0 + jax.lax.erf(h * inv_sqrt2))
        # LayerNorm over last axis (biased variance, eps=1e-12, as in torch)
        mean = jnp.mean(h, axis=-1, keepdims=True)
        var = jnp.mean((h - mean) * (h - mean), axis=-1, keepdims=True)
        h = (h - mean) * jax.lax.rsqrt(var + jnp.float32(1e-12))
        h = h * gamma_ref[...] + beta_ref[...]
        # cast ONCE per row tile to the decoder MXU dtype (bf16 by default)
        t_scratch[...] = h.astype(t_scratch.dtype)

    # decoder: (tm, H) @ (H, tv) + bias, f32 accumulation
    o_ref[...] = (jnp.dot(t_scratch[...], we_ref[...],
                          preferred_element_type=jnp.float32)
                  + bv_ref[...]).astype(o_ref.dtype)


# ----------------------------------------------------------------------------
# One-time parameter preparation (transpose / cast / pad OUTSIDE the per-step
# call).  Vocab padding happens here exactly once, not per forward pass.
# ----------------------------------------------------------------------------
def prepare_params(params, *, dense_weight_dtype=jnp.bfloat16,
                   decoder_weight_dtype=jnp.bfloat16, tv=1024):
    H = params["dense_w"].shape[0]
    V = params["embed_w"].shape[0]

    # effective vocab tile (clamped for small vocabularies) and padded vocab
    tv_eff = min(tv, _round_up(V, 128))
    V_pad = _round_up(V, tv_eff)

    w_dec_t = jnp.asarray(params["embed_w"].T, decoder_weight_dtype)   # (H, V)
    b_dec = params["decoder_bias"].reshape(1, V).astype(jnp.float32)
    if V_pad != V:
        w_dec_t = jnp.pad(w_dec_t, ((0, 0), (0, V_pad - V)))
        b_dec = jnp.pad(b_dec, ((0, 0), (0, V_pad - V)))

    return {
        "w_dense_t": jnp.asarray(params["dense_w"].T, dense_weight_dtype),  # (H, H)
        "b_dense": params["dense_b"].reshape(1, H).astype(jnp.float32),
        "gamma": params["ln_gamma"].reshape(1, H).astype(jnp.float32),
        "beta": params["ln_beta"].reshape(1, H).astype(jnp.float32),
        "w_dec_t": w_dec_t,                                # (H, V_pad), padded once
        "b_dec": b_dec,                                    # (1, V_pad)
        "vocab_size": V,                                   # original V for slicing
        "tv": tv_eff,                                      # vocab tile (divides V_pad)
    }


# ----------------------------------------------------------------------------
# Wrapper
# ----------------------------------------------------------------------------
def bert_lm_prediction_head(hidden_states, prepared, *, tm=512,
                            out_dtype=jnp.float32,
                            vmem_limit_bytes=48 * 1024 * 1024,
                            single_buffer_constants=False):
    """hidden_states: (B, S, H) float32.  Returns logits (B, S, V) out_dtype."""
    B, S, H = hidden_states.shape
    M = B * S
    x = hidden_states.reshape(M, H).astype(jnp.float32)

    w_dec_t = prepared["w_dec_t"]                          # (H, V_pad)
    b_dec = prepared["b_dec"]                              # (1, V_pad)
    V = prepared["vocab_size"]
    V_pad = w_dec_t.shape[1]
    tv_eff = prepared["tv"]

    # Row tile: clamp for small M, and keep >= 2 row tiles when M allows it so
    # the "parallel" row axis can be split across both v7x TensorCores.
    tm_eff = min(tm, _round_up(M, 8))
    if _round_up(M, 8) >= 16:
        tm_eff = min(tm_eff, _round_up(pl.cdiv(M, 2), 8))
    M_pad = _round_up(M, tm_eff)
    if M_pad != M:
        x = jnp.pad(x, ((0, M_pad - M), (0, 0)))

    grid = (M_pad // tm_eff, V_pad // tv_eff)
    rows = grid[0]

    out_itemsize = jnp.dtype(out_dtype).itemsize
    cost = pl.CostEstimate(
        flops=2 * M_pad * H * H + 2 * M_pad * H * V_pad,
        transcendentals=M_pad * H,
        bytes_accessed=(x.nbytes
                        + prepared["w_dense_t"].nbytes
                        # decoder weight + bias are re-streamed once per row tile
                        + rows * (w_dec_t.nbytes + b_dec.nbytes)
                        + M_pad * V_pad * out_itemsize),
    )

    # Optional v7x VMEM saver: constant-index blocks never change, so a single
    # buffer suffices (frees ~H*H*itemsize of VMEM for larger tm/tv).
    const_kwargs = dict(pipeline_mode=pl.Buffered(1)) if single_buffer_constants else {}
    # TODO(synk): for very large M on v6e/v5e a vocab-outer grid with the full
    # transform resident in VMEM would stream each decoder-weight tile exactly
    # once; not implemented here (row-tiled variant kept for generality).

    logits = pl.pallas_call(
        fused_head_kernel,
        out_shape=jax.ShapeDtypeStruct((M_pad, V_pad), out_dtype),
        grid_spec=pltpu.PrefetchScalarGridSpec(
            num_scalar_prefetch=0,
            grid=grid,
            in_specs=[
                pl.BlockSpec((tm_eff, H), lambda i, j: (i, 0)),                 # x rows
                pl.BlockSpec((H, H), lambda i, j: (0, 0), **const_kwargs),      # dense W^T
                pl.BlockSpec((1, H), lambda i, j: (0, 0), **const_kwargs),      # dense bias
                pl.BlockSpec((1, H), lambda i, j: (0, 0), **const_kwargs),      # ln gamma
                pl.BlockSpec((1, H), lambda i, j: (0, 0), **const_kwargs),      # ln beta
                pl.BlockSpec((H, tv_eff), lambda i, j: (0, j)),                 # embed W^T
                pl.BlockSpec((1, tv_eff), lambda i, j: (0, j)),                 # decoder bias
            ],
            out_specs=pl.BlockSpec((tm_eff, tv_eff), lambda i, j: (i, j)),
            scratch_shapes=[pltpu.VMEM((tm_eff, H), w_dec_t.dtype)],
        ),
        compiler_params=pltpu.CompilerParams(
            dimension_semantics=("parallel", "arbitrary"),
            vmem_limit_bytes=vmem_limit_bytes),
        cost_estimate=cost,
    )(x, prepared["w_dense_t"], prepared["b_dense"], prepared["gamma"],
      prepared["beta"], w_dec_t, b_dec)

    return logits[:M, :V].reshape(B, S, V)


# ----------------------------------------------------------------------------
# Pure-JAX reference for correctness checking
# ----------------------------------------------------------------------------
def reference(hidden_states, params):
    x = hidden_states
    h = x @ params["dense_w"].T + params["dense_b"]
    h = h * 0.5 * (1.0 + jax.lax.erf(h / jnp.sqrt(2.0)))
    mean = jnp.mean(h, axis=-1, keepdims=True)
    var = jnp.mean((h - mean) ** 2, axis=-1, keepdims=True)
    h = (h - mean) / jnp.sqrt(var + 1e-12)
    h = h * params["ln_gamma"] + params["ln_beta"]
    return h @ params["embed_w"].T + params["decoder_bias"]


if __name__ == "__main__":
    # Small shapes consistent with the module:
    # batch=2, seq=8, hidden=32, vocab=128
    B, S, H, V = 2, 8, 32, 128

    key = jax.random.PRNGKey(0)
    k1, k2, k3, k4 = jax.random.split(key, 4)

    hidden_states = jax.random.normal(k1, (B, S, H), dtype=jnp.float32)

    params = {
        # BertPredictionHeadTransform.dense : Linear(H, H)
        "dense_w": jax.random.normal(k2, (H, H), dtype=jnp.float32) * 0.05,
        "dense_b": jax.random.normal(k3, (H,), dtype=jnp.float32) * 0.05,
        # BertLayerNorm init: weight=1, bias=0
        "ln_gamma": jnp.ones((H,), dtype=jnp.float32),
        "ln_beta": jnp.zeros((H,), dtype=jnp.float32),
        # tied embedding weights: (vocab, hidden)
        "embed_w": jax.random.normal(k4, (V, H), dtype=jnp.float32) * 0.05,
        # self.bias = zeros(vocab)
        "decoder_bias": jnp.zeros((V,), dtype=jnp.float32),
    }

    ref = reference(hidden_states, params)

    # 1) Strict correctness check: pure f32 path.
    prepared_f32 = prepare_params(params,
                                  dense_weight_dtype=jnp.float32,
                                  decoder_weight_dtype=jnp.float32)
    out_f32 = bert_lm_prediction_head(hidden_states, prepared_f32)
    out_f32 = jax.block_until_ready(out_f32)
    assert out_f32.shape == (B, S, V), out_f32.shape
    assert jnp.allclose(out_f32, ref, atol=1e-4, rtol=1e-4), (
        float(jnp.max(jnp.abs(out_f32 - ref))))

    # 2) Production path: bf16 MXU operands with f32 accumulation (default).
    prepared_bf16 = prepare_params(params)
    out_bf16 = bert_lm_prediction_head(hidden_states, prepared_bf16)
    out_bf16 = jax.block_until_ready(out_bf16)
    assert out_bf16.shape == (B, S, V), out_bf16.shape
    assert jnp.allclose(out_bf16, ref, atol=3e-2, rtol=3e-2), (
        float(jnp.max(jnp.abs(out_bf16 - ref))))

    print("KERNEL_OK")
</pallas_src>

<mosaic_0001>
module attributes {stable_mosaic.version = 11 : i64} {
  func.func @fused_head_kernel(%arg0: i32, %arg1: i32, %arg2: memref<8x32xf32, #tpu.memory_space<vmem>>, %arg3: memref<32x32xf32, #tpu.memory_space<vmem>>, %arg4: memref<1x32xf32, #tpu.memory_space<vmem>>, %arg5: memref<1x32xf32, #tpu.memory_space<vmem>>, %arg6: memref<1x32xf32, #tpu.memory_space<vmem>>, %arg7: memref<32x128xf32, #tpu.memory_space<vmem>>, %arg8: memref<1x128xf32, #tpu.memory_space<vmem>>, %arg9: memref<8x128xf32, #tpu.memory_space<vmem>>, %arg10: memref<8x32xf32, #tpu.memory_space<vmem>>) attributes {dimension_semantics = [#tpu.dimension_semantics<parallel>, #tpu.dimension_semantics<arbitrary>], iteration_bounds = array<i64: 2, 1>, scalar_prefetch = 0 : i64, scratch_operands = 1 : i64, tpu.core_type = #tpu.core_type<tc>, window_params = [{transform_indices = @transform_0, window_bounds = array<i64: 8, 32>}, {pipeline_mode = #tpu.pipeline_mode<synchronous>, transform_indices = @transform_1, window_bounds = array<i64: 32, 32>}, {pipeline_mode = #tpu.pipeline_mode<synchronous>, transform_indices = @transform_2, window_bounds = array<i64: 1, 32>}, {pipeline_mode = #tpu.pipeline_mode<synchronous>, transform_indices = @transform_3, window_bounds = array<i64: 1, 32>}, {pipeline_mode = #tpu.pipeline_mode<synchronous>, transform_indices = @transform_4, window_bounds = array<i64: 1, 32>}, {transform_indices = @transform_5, window_bounds = array<i64: 32, 128>}, {transform_indices = @transform_6, window_bounds = array<i64: 1, 128>}, {transform_indices = @transform_7, window_bounds = array<i64: 8, 128>}]} {
    %c0_i32 = arith.constant 0 : i32
    %0 = arith.cmpi eq, %arg1, %c0_i32 : i32
    %1 = arith.extui %0 : i1 to i32
    %c0_i32_0 = arith.constant 0 : i32
    %2 = arith.cmpi ne, %1, %c0_i32_0 : i32
    scf.if %2 {
      %c0_8 = arith.constant 0 : index
      %c0_9 = arith.constant 0 : index
      %10 = vector.load %arg2[%c0_8, %c0_9] : memref<8x32xf32, #tpu.memory_space<vmem>>, vector<8x32xf32>
      %c0_10 = arith.constant 0 : index
      %c0_11 = arith.constant 0 : index
      %11 = vector.load %arg3[%c0_10, %c0_11] : memref<32x32xf32, #tpu.memory_space<vmem>>, vector<32x32xf32>
      %cst_12 = arith.constant dense<0.000000e+00> : vector<8x32xf32>
      %12 = tpu.matmul %10, %11, %cst_12 {dimension_numbers = #tpu.dot_dimension_numbers<[1], [0], [0], [1], [0, 0, 1, 1], [], []>} : vector<8x32xf32>, vector<32x32xf32>, vector<8x32xf32> -> vector<8x32xf32>
      %c0_13 = arith.constant 0 : index
      %c0_14 = arith.constant 0 : index
      %13 = vector.load %arg4[%c0_13, %c0_14] : memref<1x32xf32, #tpu.memory_space<vmem>>, vector<1x32xf32>
      %14 = vector.broadcast %13 : vector<1x32xf32> to vector<8x32xf32>
      %15 = arith.addf %12, %14 : vector<8x32xf32>
      %cst_15 = arith.constant 5.000000e-01 : f32
      %16 = vector.broadcast %cst_15 : f32 to vector<8x32xf32>
      %17 = arith.mulf %15, %16 : vector<8x32xf32>
      %cst_16 = arith.constant 0.707106769 : f32
      %18 = vector.broadcast %cst_16 : f32 to vector<8x32xf32>
      %19 = arith.mulf %15, %18 : vector<8x32xf32>
      %20 = math.erf %19 : vector<8x32xf32>
      %cst_17 = arith.constant 1.000000e+00 : f32
      %21 = vector.broadcast %cst_17 : f32 to vector<8x32xf32>
      %22 = arith.addf %21, %20 : vector<8x32xf32>
      %23 = arith.mulf %17, %22 : vector<8x32xf32>
      %cst_18 = arith.constant dense<0.000000e+00> : vector<8xf32>
      %24 = vector.multi_reduction <add>, %23, %cst_18 [1] : vector<8x32xf32> to vector<8xf32>
      %25 = vector.shape_cast %24 : vector<8xf32> to vector<8x1xf32>
      %cst_19 = arith.constant 3.200000e+01 : f32
      %26 = vector.broadcast %cst_19 : f32 to vector<8x1xf32>
      %27 = arith.divf %25, %26 : vector<8x1xf32>
      %28 = vector.broadcast %27 : vector<8x1xf32> to vector<8x32xf32>
      %29 = arith.subf %23, %28 : vector<8x32xf32>
      %30 = vector.broadcast %27 : vector<8x1xf32> to vector<8x32xf32>
      %31 = arith.subf %23, %30 : vector<8x32xf32>
      %32 = arith.mulf %29, %31 : vector<8x32xf32>
      %cst_20 = arith.constant dense<0.000000e+00> : vector<8xf32>
      %33 = vector.multi_reduction <add>, %32, %cst_20 [1] : vector<8x32xf32> to vector<8xf32>
      %34 = vector.shape_cast %33 : vector<8xf32> to vector<8x1xf32>
      %cst_21 = arith.constant 3.200000e+01 : f32
      %35 = vector.broadcast %cst_21 : f32 to vector<8x1xf32>
      %36 = arith.divf %34, %35 : vector<8x1xf32>
      %37 = vector.broadcast %27 : vector<8x1xf32> to vector<8x32xf32>
      %38 = arith.subf %23, %37 : vector<8x32xf32>
      %cst_22 = arith.constant 9.99999996E-13 : f32
      %39 = vector.broadcast %cst_22 : f32 to vector<8x1xf32>
      %40 = arith.addf %36, %39 : vector<8x1xf32>
      %41 = math.rsqrt %40 : vector<8x1xf32>
      %42 = vector.broadcast %41 : vector<8x1xf32> to vector<8x32xf32>
      %43 = arith.mulf %38, %42 : vector<8x32xf32>
      %c0_23 = arith.constant 0 : index
      %c0_24 = arith.constant 0 : index
      %44 = vector.load %arg5[%c0_23, %c0_24] : memref<1x32xf32, #tpu.memory_space<vmem>>, vector<1x32xf32>
      %45 = vector.broadcast %44 : vector<1x32xf32> to vector<8x32xf32>
      %46 = arith.mulf %43, %45 : vector<8x32xf32>
      %c0_25 = arith.constant 0 : index
      %c0_26 = arith.constant 0 : index
      %47 = vector.load %arg6[%c0_25, %c0_26] : memref<1x32xf32, #tpu.memory_space<vmem>>, vector<1x32xf32>
      %48 = vector.broadcast %47 : vector<1x32xf32> to vector<8x32xf32>
      %49 = arith.addf %46, %48 : vector<8x32xf32>
      %c0_27 = arith.constant 0 : index
      %c0_28 = arith.constant 0 : index
      %50 = vector.load %arg10[%c0_27, %c0_28] : memref<8x32xf32, #tpu.memory_space<vmem>>, vector<8x32xf32>
      tpu.vector_store %arg10[%c0_27, %c0_28], %49 {strides = array<i32>} : memref<8x32xf32, #tpu.memory_space<vmem>>, vector<8x32xf32>,
    } else {
    }
    %c0 = arith.constant 0 : index
    %c0_1 = arith.constant 0 : index
    %3 = vector.load %arg10[%c0, %c0_1] : memref<8x32xf32, #tpu.memory_space<vmem>>, vector<8x32xf32>
    %c0_2 = arith.constant 0 : index
    %c0_3 = arith.constant 0 : index
    %4 = vector.load %arg7[%c0_2, %c0_3] : memref<32x128xf32, #tpu.memory_space<vmem>>, vector<32x128xf32>
    %cst = arith.constant dense<0.000000e+00> : vector<8x128xf32>
    %5 = tpu.matmul %3, %4, %cst {dimension_numbers = #tpu.dot_dimension_numbers<[1], [0], [0], [1], [0, 0, 1, 1], [], []>} : vector<8x32xf32>, vector<32x128xf32>, vector<8x128xf32> -> vector<8x128xf32>
    %c0_4 = arith.constant 0 : index
    %c0_5 = arith.constant 0 : index
    %6 = vector.load %arg8[%c0_4, %c0_5] : memref<1x128xf32, #tpu.memory_space<vmem>>, vector<1x128xf32>
    %7 = vector.broadcast %6 : vector<1x128xf32> to vector<8x128xf32>
    %8 = arith.addf %5, %7 : vector<8x128xf32>
    %c0_6 = arith.constant 0 : index
    %c0_7 = arith.constant 0 : index
    %9 = vector.load %arg9[%c0_6, %c0_7] : memref<8x128xf32, #tpu.memory_space<vmem>>, vector<8x128xf32>
    tpu.vector_store %arg9[%c0_6, %c0_7], %8 {strides = array<i32>} : memref<8x128xf32, #tpu.memory_space<vmem>>, vector<8x128xf32>,
    return
  }
  func.func @transform_0(%arg0: i32, %arg1: i32) -> (i32, i32) {
    %c0_i32 = arith.constant 0 : i32
    %c0_i32_0 = arith.constant 0 : i32
    return %arg0, %c0_i32 : i32, i32
  }
  func.func @transform_1(%arg0: i32, %arg1: i32) -> (i32, i32) {
    %c0_i32 = arith.constant 0 : i32
    %c0_i32_0 = arith.constant 0 : i32
    %c0_i32_1 = arith.constant 0 : i32
    return %c0_i32, %c0_i32_0 : i32, i32
  }
  func.func @transform_2(%arg0: i32, %arg1: i32) -> (i32, i32) {
    %c0_i32 = arith.constant 0 : i32
    %c0_i32_0 = arith.constant 0 : i32
    %c0_i32_1 = arith.constant 0 : i32
    return %c0_i32, %c0_i32_0 : i32, i32
  }
  func.func @transform_3(%arg0: i32, %arg1: i32) -> (i32, i32) {
    %c0_i32 = arith.constant 0 : i32
    %c0_i32_0 = arith.constant 0 : i32
    %c0_i32_1 = arith.constant 0 : i32
    return %c0_i32, %c0_i32_0 : i32, i32
  }
  func.func @transform_4(%arg0: i32, %arg1: i32) -> (i32, i32) {
    %c0_i32 = arith.constant 0 : i32
    %c0_i32_0 = arith.constant 0 : i32
    %c0_i32_1 = arith.constant 0 : i32
    return %c0_i32, %c0_i32_0 : i32, i32
  }
  func.func @transform_5(%arg0: i32, %arg1: i32) -> (i32, i32) {
    %c0_i32 = arith.constant 0 : i32
    %c0_i32_0 = arith.constant 0 : i32
    return %c0_i32, %arg1 : i32, i32
  }
  func.func @transform_6(%arg0: i32, %arg1: i32) -> (i32, i32) {
    %c0_i32 = arith.constant 0 : i32
    %c0_i32_0 = arith.constant 0 : i32
    return %c0_i32, %arg1 : i32, i32
  }
  func.func @transform_7(%arg0: i32, %arg1: i32) -> (i32, i32) {
    %c0_i32 = arith.constant 0 : i32
    return %arg0, %arg1 : i32, i32
  }
}

</mosaic_0001>

<llo_original>
// kernel: tpu_custom_call.1
$region0: #{tpu_custom_call.1}
  #allocation0 [shape = 'u32[]', space=smem, size = 0x4, offset = 0x4, fixed_abs, tag = 'smem constant byte address 0x4 - core index']
  #allocation1 [shape = 'u32[144,128]{1,0:T(1,128)}', space=vmem, size = 0x12000, scoped, tag = 'internal scratch']
  #allocation2 [shape = 'f32[8,32]{1,0:T(8,128)}', space=vmem, size = 0x1000, scoped, tag = 'scratch operand']
  %s0 = inlined_call_operand.hbm [shape: f32[16,32], index: 0, kind: input, shape index: {}]
  %s1 = inlined_call_operand.hbm [shape: f32[32,32], index: 1, kind: input, shape index: {}]
  %s2 = inlined_call_operand.vmem [shape: f32[1,32], index: 2, kind: input, shape index: {}]
  %s3 = inlined_call_operand.vmem [shape: f32[1,32], index: 3, kind: input, shape index: {}]
  %s4 = inlined_call_operand.vmem [shape: f32[1,32], index: 4, kind: input, shape index: {}]
  %s5 = inlined_call_operand.hbm [shape: f32[32,128], index: 5, kind: input, shape index: {}]
  %s6 = inlined_call_operand.vmem [shape: f32[1,128], index: 6, kind: input, shape index: {}]
  %s7 = inlined_call_operand.hbm [shape: f32[16,128], index: 7, kind: output, shape index: {}]
  %s8 = sld [smem:[#allocation0]]
  $region77: #{tpu_custom_call.1} parent=0
    _
  %s10 = ssub.s32 1, %s8
  %s11 = scalar_select 0, %s10, %s8
  $region1: #{tpu_custom_call.1} parent=0
    #allocation3 [shape = 'u8[8192]{0}', space=vmem, size = 0x2000, scoped, tag = 'input window, operand 0']
    #allocation4 [shape = 's32[2]{0}', space=sflag, size = 0x8, scoped, tag = 'scoped memory for tpu_custom_call.1']
    #allocation5 [shape = 's32[2]{0}', space=sflag, size = 0x8, scoped, tag = 'scoped memory for tpu_custom_call.1']
    #allocation6 [shape = 'u8[16384]{0}', space=vmem, size = 0x4000, scoped, tag = 'input window, operand 1, single buffered']
    #allocation7 [shape = 's32[1]{0}', space=sflag, size = 0x4, scoped, tag = 'scoped memory for tpu_custom_call.1']
    #allocation8 [shape = 'u8[16384]{0}', space=vmem, size = 0x4000, scoped, tag = 'input window, operand 5, single buffered']
    #allocation9 [shape = 'u8[8192]{0}', space=vmem, size = 0x2000, scoped, tag = 'output window, operand 0']
    %12 = vsyncpa [#allocation4], 0
    %s13 = scalar_lea.sflag [#allocation4], 1
    %14 = vsyncpa %s13, 0
    %15 = vsyncpa [#allocation7], 0
    %16 = vsyncpa [#allocation5], 0
    %s17 = scalar_lea.sflag [#allocation5], 1
    %18 = vsyncpa %s17, 0
    loop: start=0, step=1, limit=4
    $region2: #{tpu_custom_call.1} parent=1 // loop_pre_header
      _
    $region3: #{tpu_custom_call.1} parent=1 // loop_header
      %s20 = sphi 0, %s24
      %p21 = scmp.ge.s32.totalorder %s20, 4
      %s27 = sphi 0, %s39
      %s28 = sphi 0, %s35
      %s29 = sphi 0, %s27
      %s30 = sphi 0, %s28
      %s31 = sphi 0, %s29
      %s32 = sphi 0, %s30
      %s42 = sphi 0, %s44
      %s45 = sphi 0, %s42
      %s46 = sphi 0, %s45
      %s62 = sphi 0, %s46
      %s66 = sphi 0, %s66
      %s68 = sphi 0, %s66
      %s69 = sphi 0, %s68
      %s83 = sphi 0, %s69
      %s87 = sphi 0, %s87
      %s89 = sphi 0, %s87
      %s90 = sphi 0, %s89
      %s104 = sphi 0, %s90
      %s108 = sphi 0, %s108
      %s110 = sphi 0, %s108
      %s111 = sphi 0, %s110
      %s125 = sphi 0, %s111
      %s129 = sphi 0, %s129
      %s131 = sphi 0, %s129
      %s132 = sphi 0, %s131
      %s146 = sphi 0, %s132
      %s152 = sphi 0, %s154
      %s155 = sphi 0, %s152
      %s156 = sphi 0, %s155
      %s172 = sphi 0, %s156
      %s178 = sphi 0, %s180
      %s181 = sphi 0, %s178
      %s182 = sphi 0, %s181
      %s198 = sphi 0, %s182
      %s206 = sphi 0, %s208
      %s209 = sphi 0, %s206
      %s210 = sphi 0, %s209
      %s226 = sphi 0, %s210
    $region4: #{tpu_custom_call.1} parent=1 // loop_header_branch
      %23 = sbr.rel (%p21) target = $region8
    $region5: #{tpu_custom_call.1} parent=1 // loop_body
      %s25 = ssub.s32 %s20, 1
      %s26 = ssub.s32 %s20, 2
      %s33 = sadd.s32 1, %s28
      %p34 = scmp.ge.s32.totalorder %s33, 1
      %s35 = scalar_select %p34, 0, %s33
      %s36 = sadd.s32 1, %s27
      %s37 = scalar_select %p34, %s36, %s27
      %p38 = scmp.ge.s32.totalorder %s37, 2
      %s39 = scalar_select %p38, 0, %s37
      %s40 = ssub.s32 %s27, %s39
      %p41 = scmp.eq.s32.totalorder %s40, 0
      %s43 = sadd.s32 %s42, 1
      %s44 = scalar_select %p41, %s42, %s43
      %p47 = pneg %p41
      %p48 = scmp.eq.s32.totalorder %s20, 1
      %p49 = por %p47, %p48
      %p50 = scmp.ne.s32.totalorder %s42, %s45
      %p51 = scmp.eq.s32.totalorder %s20, 0
      %p52 = por %p50, %p51
      %p53 = scmp.ne.s32.totalorder %s42, %s45
      %p54 = scmp.eq.s32.totalorder %s25, 1
      %p55 = por %p53, %p54
      %p56 = scmp.ne.s32.totalorder %s45, %s46
      %p57 = scmp.eq.s32.totalorder %s25, 0
      %p58 = por %p56, %p57
      %p59 = scmp.ne.s32.totalorder %s45, %s46
      %p60 = scmp.eq.s32.totalorder %s26, 1
      %p61 = por %p59, %p60
      %p63 = scmp.ne.s32.totalorder %s46, %s62
      %p64 = scmp.eq.s32.totalorder %s26, 0
      %p65 = por %p63, %p64
      %s67 = sadd.s32 %s66, 1
      %p70 = scmp.eq.s32.totalorder %s20, 1
      %p71 = scmp.ne.s32.totalorder %s66, %s68
      %p72 = scmp.eq.s32.totalorder %s20, 0
      %p73 = por %p71, %p72
      %p74 = scmp.ne.s32.totalorder %s66, %s68
      %p75 = scmp.eq.s32.totalorder %s25, 1
      %p76 = por %p74, %p75
      %p77 = scmp.ne.s32.totalorder %s68, %s69
      %p78 = scmp.eq.s32.totalorder %s25, 0
      %p79 = por %p77, %p78
      %p80 = scmp.ne.s32.totalorder %s68, %s69
      %p81 = scmp.eq.s32.totalorder %s26, 1
      %p82 = por %p80, %p81
      %p84 = scmp.ne.s32.totalorder %s69, %s83
      %p85 = scmp.eq.s32.totalorder %s26, 0
      %p86 = por %p84, %p85
      %s88 = sadd.s32 %s87, 1
      %p91 = scmp.eq.s32.totalorder %s20, 1
      %p92 = scmp.ne.s32.totalorder %s87, %s89
      %p93 = scmp.eq.s32.totalorder %s20, 0
      %p94 = por %p92, %p93
      %p95 = scmp.ne.s32.totalorder %s87, %s89
      %p96 = scmp.eq.s32.totalorder %s25, 1
      %p97 = por %p95, %p96
      %p98 = scmp.ne.s32.totalorder %s89, %s90
      %p99 = scmp.eq.s32.totalorder %s25, 0
      %p100 = por %p98, %p99
      %p101 = scmp.ne.s32.totalorder %s89, %s90
      %p102 = scmp.eq.s32.totalorder %s26, 1
      %p103 = por %p101, %p102
      %p105 = scmp.ne.s32.totalorder %s90, %s104
      %p106 = scmp.eq.s32.totalorder %s26, 0
      %p107 = por %p105, %p106
      %s109 = sadd.s32 %s108, 1
      %p112 = scmp.eq.s32.totalorder %s20, 1
      %p113 = scmp.ne.s32.totalorder %s108, %s110
      %p114 = scmp.eq.s32.totalorder %s20, 0
      %p115 = por %p113, %p114
      %p116 = scmp.ne.s32.totalorder %s108, %s110
      %p117 = scmp.eq.s32.totalorder %s25, 1
      %p118 = por %p116, %p117
      %p119 = scmp.ne.s32.totalorder %s110, %s111
      %p120 = scmp.eq.s32.totalorder %s25, 0
      %p121 = por %p119, %p120
      %p122 = scmp.ne.s32.totalorder %s110, %s111
      %p123 = scmp.eq.s32.totalorder %s26, 1
      %p124 = por %p122, %p123
      %p126 = scmp.ne.s32.totalorder %s111, %s125
      %p127 = scmp.eq.s32.totalorder %s26, 0
      %p128 = por %p126, %p127
      %s130 = sadd.s32 %s129, 1
      %p133 = scmp.eq.s32.totalorder %s20, 1
      %p134 = scmp.ne.s32.totalorder %s129, %s131
      %p135 = scmp.eq.s32.totalorder %s20, 0
      %p136 = por %p134, %p135
      %p137 = scmp.ne.s32.totalorder %s129, %s131
      %p138 = scmp.eq.s32.totalorder %s25, 1
      %p139 = por %p137, %p138
      %p140 = scmp.ne.s32.totalorder %s131, %s132
      %p141 = scmp.eq.s32.totalorder %s25, 0
      %p142 = por %p140, %p141
      %p143 = scmp.ne.s32.totalorder %s131, %s132
      %p144 = scmp.eq.s32.totalorder %s26, 1
      %p145 = por %p143, %p144
      %p147 = scmp.ne.s32.totalorder %s132, %s146
      %p148 = scmp.eq.s32.totalorder %s26, 0
      %p149 = por %p147, %p148
      %s150 = ssub.s32 %s28, %s35
      %p151 = scmp.eq.s32.totalorder %s150, 0
      %s153 = sadd.s32 %s152, 1
      %s154 = scalar_select %p151, %s152, %s153
      %p157 = pneg %p151
      %p158 = scmp.eq.s32.totalorder %s20, 1
      %p159 = por %p157, %p158
      %p160 = scmp.ne.s32.totalorder %s152, %s155
      %p161 = scmp.eq.s32.totalorder %s20, 0
      %p162 = por %p160, %p161
      %p163 = scmp.ne.s32.totalorder %s152, %s155
      %p164 = scmp.eq.s32.totalorder %s25, 1
      %p165 = por %p163, %p164
      %p166 = scmp.ne.s32.totalorder %s155, %s156
      %p167 = scmp.eq.s32.totalorder %s25, 0
      %p168 = por %p166, %p167
      %p169 = scmp.ne.s32.totalorder %s155, %s156
      %p170 = scmp.eq.s32.totalorder %s26, 1
      %p171 = por %p169, %p170
      %p173 = scmp.ne.s32.totalorder %s156, %s172
      %p174 = scmp.eq.s32.totalorder %s26, 0
      %p175 = por %p173, %p174
      %s176 = ssub.s32 %s28, %s35
      %p177 = scmp.eq.s32.totalorder %s176, 0
      %s179 = sadd.s32 %s178, 1
      %s180 = scalar_select %p177, %s178, %s179
      %p183 = pneg %p177
      %p184 = scmp.eq.s32.totalorder %s20, 1
      %p185 = por %p183, %p184
      %p186 = scmp.ne.s32.totalorder %s178, %s181
      %p187 = scmp.eq.s32.totalorder %s20, 0
      %p188 = por %p186, %p187
      %p189 = scmp.ne.s32.totalorder %s178, %s181
      %p190 = scmp.eq.s32.totalorder %s25, 1
      %p191 = por %p189, %p190
      %p192 = scmp.ne.s32.totalorder %s181, %s182
      %p193 = scmp.eq.s32.totalorder %s25, 0
      %p194 = por %p192, %p193
      %p195 = scmp.ne.s32.totalorder %s181, %s182
      %p196 = scmp.eq.s32.totalorder %s26, 1
      %p197 = por %p195, %p196
      %p199 = scmp.ne.s32.totalorder %s182, %s198
      %p200 = scmp.eq.s32.totalorder %s26, 0
      %p201 = por %p199, %p200
      %s202 = ssub.s32 %s27, %s39
      %s203 = ssub.s32 %s28, %s35
      %s204 = sor.u32 %s202, %s203
      %p205 = scmp.eq.s32.totalorder %s204, 0
      %s207 = sadd.s32 %s206, 1
      %s208 = scalar_select %p205, %s206, %s207
      %p211 = pneg %p205
      %p212 = scmp.eq.s32.totalorder %s20, 1
      %p213 = por %p211, %p212
      %p214 = scmp.ne.s32.totalorder %s206, %s209
      %p215 = scmp.eq.s32.totalorder %s20, 0
      %p216 = por %p214, %p215
      %p217 = scmp.ne.s32.totalorder %s206, %s209
      %p218 = scmp.eq.s32.totalorder %s25, 1
      %p219 = por %p217, %p218
      %p220 = scmp.ne.s32.totalorder %s209, %s210
      %p221 = scmp.eq.s32.totalorder %s25, 0
      %p222 = por %p220, %p221
      %p223 = scmp.ne.s32.totalorder %s209, %s210
      %p224 = scmp.eq.s32.totalorder %s26, 1
      %p225 = por %p223, %p224
      %p227 = scmp.ne.s32.totalorder %s210, %s226
      %p228 = scmp.eq.s32.totalorder %s26, 0
      %p229 = por %p227, %p228
      %p230 = scmp.le.s32.totalorder 1, %s20
      %p231 = scmp.lt.s32.totalorder %s20, 3
      %p232 = pnand %p230, %p231
      %p233 = pneg %p232
      // Predicated region
      $region9: #{tpu_custom_call.1} parent=5 // pred_check
        _
      $region10: #{tpu_custom_call.1} parent=5 // pred_check_branch
        %235 = sbr.rel (%p232) target = $region12
      $region11: #{tpu_custom_call.1} parent=5 // pred_region
        %s236 = ssub.s32 %s20, 1
        // Predicated region
        $region13: #{tpu_custom_call.1} parent=11 // pred_check
          %p237 = pneg %p79
        $region14: #{tpu_custom_call.1} parent=11 // pred_check_branch
          %239 = sbr.rel (%p237) target = $region16
        $region15: #{tpu_custom_call.1} parent=11 // pred_region
          %s241 = ssub.s32 512, 512
          %242 = vsyncadd [#allocation7], %s241
          %s243 = sshll.u32 [#allocation6], 4
          %s244 = int_to_ptr.vmem [resolvable:$true] %s243
          %249 = dma.hbm_to_vmem [thread:$0]  %s1, 512, %s244, [#allocation7], 128, 128, 8
        $region16: #{tpu_custom_call.1} parent=11 // pred_fallthru
          _
        // Predicated region
        $region17: #{tpu_custom_call.1} parent=11 // pred_check
          %p250 = pneg %p100
        $region18: #{tpu_custom_call.1} parent=11 // pred_check_branch
          %252 = sbr.rel (%p250) target = $region20
        $region19: #{tpu_custom_call.1} parent=11 // pred_region
          _
        $region20: #{tpu_custom_call.1} parent=11 // pred_fallthru
          _
        // Predicated region
        $region21: #{tpu_custom_call.1} parent=11 // pred_check
          %p253 = pneg %p121
        $region22: #{tpu_custom_call.1} parent=11 // pred_check_branch
          %255 = sbr.rel (%p253) target = $region24
        $region23: #{tpu_custom_call.1} parent=11 // pred_region
          _
        $region24: #{tpu_custom_call.1} parent=11 // pred_fallthru
          _
        // Predicated region
        $region25: #{tpu_custom_call.1} parent=11 // pred_check
          %p256 = pneg %p142
        $region26: #{tpu_custom_call.1} parent=11 // pred_check_branch
          %258 = sbr.rel (%p256) target = $region28
        $region27: #{tpu_custom_call.1} parent=11 // pred_region
          _
        $region28: #{tpu_custom_call.1} parent=11 // pred_fallthru
          _
        // Predicated region
        $region29: #{tpu_custom_call.1} parent=11 // pred_check
          %p259 = pneg %p168
        $region30: #{tpu_custom_call.1} parent=11 // pred_check_branch
          %261 = sbr.rel (%p259) target = $region32
        $region31: #{tpu_custom_call.1} parent=11 // pred_region
          %s263 = ssub.s32 512, 512
          %264 = vsyncadd [#allocation7], %s263
          %s265 = smul.addr %s30, 128
          %s266 = scalar_lea.hbm %s5, %s265
          %s267 = sshll.u32 [#allocation8], 4
          %s268 = int_to_ptr.vmem [resolvable:$true] %s267
          %273 = dma.hbm_to_vmem [thread:$0]  %s266, 512, %s268, [#allocation7], 128, 128, 8
        $region32: #{tpu_custom_call.1} parent=11 // pred_fallthru
          _
        // Predicated region
        $region33: #{tpu_custom_call.1} parent=11 // pred_check
          %p274 = pneg %p194
        $region34: #{tpu_custom_call.1} parent=11 // pred_check_branch
          %276 = sbr.rel (%p274) target = $region36
        $region35: #{tpu_custom_call.1} parent=11 // pred_region
          %p277 = scmp.lt.s32.totalorder %s30, 0
          %s278 = scalar_select %p277, %s30, 0
          %s279 = scalar_lea.vmem %s6, %s278
        $region36: #{tpu_custom_call.1} parent=11 // pred_fallthru
          _
      $region12: #{tpu_custom_call.1} parent=5 // pred_fallthru
        _
      %p280 = scmp.lt.s32.totalorder %s20, 2
      // Predicated region
      $region37: #{tpu_custom_call.1} parent=5 // pred_check
        %p281 = pneg %p280
      $region38: #{tpu_custom_call.1} parent=5 // pred_check_branch
        %283 = sbr.rel (%p281) target = $region40
      $region39: #{tpu_custom_call.1} parent=5 // pred_region
        // Predicated region
        $region41: #{tpu_custom_call.1} parent=39 // pred_check
          %p284 = pneg %p52
        $region42: #{tpu_custom_call.1} parent=39 // pred_check_branch
          %286 = sbr.rel (%p284) target = $region44
        $region43: #{tpu_custom_call.1} parent=39 // pred_region
          %s287 = sand.u32 %s42, 1
          %s288 = scalar_lea.sflag [#allocation4], %s287
          %s289 = sand.u32 %s42, 1
          %s290 = smul.addr %s289, 8
          %s291 = scalar_lea.vmem [#allocation3], %s290
          %s293 = ssub.s32 128, 128
          %294 = vsyncadd %s288, %s293
          %s295 = smul.addr %s27, 128
          %s296 = scalar_lea.hbm %s0, %s295
          %s298 = sshll.u32 %s291, 4
          %s299 = int_to_ptr.vmem [resolvable:$true] %s298
          %301 = dma.hbm_to_vmem [thread:$0]  %s296, 128, %s299, %s288
        $region44: #{tpu_custom_call.1} parent=39 // pred_fallthru
          _
      $region40: #{tpu_custom_call.1} parent=5 // pred_fallthru
        _
      %p302 = scmp.le.s32.totalorder 1, %s20
      %p303 = scmp.lt.s32.totalorder %s20, 3
      %p304 = pnand %p302, %p303
      %p305 = pneg %p304
      // Predicated region
      $region45: #{tpu_custom_call.1} parent=5 // pred_check
        _
      $region46: #{tpu_custom_call.1} parent=5 // pred_check_branch
        %307 = sbr.rel (%p304) target = $region48
      $region47: #{tpu_custom_call.1} parent=5 // pred_region
        %s308 = ssub.s32 %s20, 1
        %s309 = sand.u32 %s45, 1
        %s310 = scalar_lea.sflag [#allocation4], %s309
        %s311 = sand.u32 %s45, 1
        %s312 = smul.addr %s311, 8
        %s313 = scalar_lea.vmem [#allocation3], %s312
        // Predicated region
        $region49: #{tpu_custom_call.1} parent=47 // pred_check
          %p314 = pneg %p58
        $region50: #{tpu_custom_call.1} parent=47 // pred_check_branch
          %316 = sbr.rel (%p314) target = $region52
        $region51: #{tpu_custom_call.1} parent=47 // pred_region
          %317 = dma.done %s310, 128
        $region52: #{tpu_custom_call.1} parent=47 // pred_fallthru
          _
        // Predicated region
        $region53: #{tpu_custom_call.1} parent=47 // pred_check
          %p318 = pneg %p79
        $region54: #{tpu_custom_call.1} parent=47 // pred_check_branch
          %320 = sbr.rel (%p318) target = $region56
        $region55: #{tpu_custom_call.1} parent=47 // pred_region
          %321 = dma.done [#allocation7], 512
        $region56: #{tpu_custom_call.1} parent=47 // pred_fallthru
          _
        // Predicated region
        $region57: #{tpu_custom_call.1} parent=47 // pred_check
          %p322 = pneg %p168
        $region58: #{tpu_custom_call.1} parent=47 // pred_check_branch
          %324 = sbr.rel (%p322) target = $region60
        $region59: #{tpu_custom_call.1} parent=47 // pred_region
          %325 = dma.done [#allocation7], 512
        $region60: #{tpu_custom_call.1} parent=47 // pred_fallthru
          _
        %s326 = sand.u32 %s45, 1
        %s327 = scalar_lea.sflag [#allocation4], %s326
        %s328 = sand.u32 %s45, 1
        %s329 = smul.addr %s328, 8
        %s330 = scalar_lea.vmem [#allocation3], %s329
        %p331 = pneg %p58
        %p332 = pneg %p55
        %p333 = pneg %p79
        %p334 = pneg %p76
        %p335 = pneg %p100
        %p336 = pneg %p97
        %p337 = pneg %p121
        %p338 = pneg %p118
        %p339 = pneg %p142
        %p340 = pneg %p139
        %p341 = pneg %p168
        %p342 = pneg %p165
        %p343 = scmp.lt.s32.totalorder %s30, 0
        %s344 = scalar_select %p343, %s30, 0
        %s345 = scalar_lea.vmem %s6, %s344
        %p346 = pneg %p194
        %p347 = pneg %p191
        %p348 = pneg %p222
        %p349 = pneg %p219
        %s350 = sand.u32 %s209, 1
        %s351 = scalar_lea.sflag [#allocation5], %s350
        %s352 = sand.u32 %s209, 1
        %s353 = smul.addr %s352, 8
        %s354 = scalar_lea.vmem [#allocation9], %s353
        %p355 = scmp.lt.s32.totalorder %s30, 0
        %s356 = scalar_select %p355, %s30, 0
        %s357 = scalar_lea.vmem %s6, %s356
        %p358 = scmp.eq.s32.totalorder %s30, 0
        // Predicated region
        $region61: #{tpu_custom_call.1} parent=47 // pred_check
          %p359 = pneg %p358
        $region62: #{tpu_custom_call.1} parent=47 // pred_check_branch
          %361 = sbr.rel (%p359) target = $region64
        $region63: #{tpu_custom_call.1} parent=47 // pred_region
          %v362 = vld [vmem:[%s313] sm:$0xff]
          %v363 = vld [vmem:[#allocation6] sm:$0xff]
          %v364 = vld [vmem:[#allocation6 + $0x8] sm:$0xff]
          %v365 = vld [vmem:[#allocation6 + $0x10] sm:$0xff]
          %v366 = vld [vmem:[#allocation6 + $0x18] sm:$0xff]
          %v367 = vld [vmem:[%s2] sm:$0x1]
          %v369 = vlaneseq
          %v370 = vshrl.u32 %v369, 7
          %v371 = vsub.s32 0, %v370
          %v372 = vrot.slane %v367, %v371
          %vm374 = vcmask 261120
          %v376 = vsel %vm374, %v362, 0
          %378 = vmatprep.subr.mxu0 0.0
          %379 = vmatpush1.msra.mxu0 %v363
          %380 = vmatprep.subr.mxu0 0.0
          %381 = vmatpush1.msra.mxu0 %v364
          %382 = vmatprep.subr.mxu0 0.0
          %383 = vmatpush1.msra.mxu0 %v365
          %384 = vmatprep.subr.mxu0 0.0
          %385 = vmatpush1.msra.mxu0 %v366
          %386 = vmatprep.subr.mxu0 0.0
          %387 = vmatpush1.msra.mxu0 0.0
          %388 = vmatprep.subr.mxu0 0.0
          %389 = vmatpush1.msra.mxu0 0.0
          %390 = vmatprep.subr.mxu0 0.0
          %391 = vmatpush1.msra.mxu0 0.0
          %392 = vmatprep.subr.mxu0 0.0
          %393 = vmatpush1.msra.mxu0 0.0
          %394 = vmatprep.subr.mxu0 0.0
          %395 = vmatpush1.msra.mxu0 0.0
          %396 = vmatprep.subr.mxu0 0.0
          %397 = vmatpush1.msra.mxu0 0.0
          %398 = vmatprep.subr.mxu0 0.0
          %399 = vmatpush1.msra.mxu0 0.0
          %400 = vmatprep.subr.mxu0 0.0
          %401 = vmatpush1.msra.mxu0 0.0
          %402 = vmatprep.subr.mxu0 0.0
          %403 = vmatpush1.msra.mxu0 0.0
          %404 = vmatprep.subr.mxu0 0.0
          %405 = vmatpush1.msra.mxu0 0.0
          %406 = vmatprep.subr.mxu0 0.0
          %407 = vmatpush1.msra.mxu0 0.0
          %408 = vmatprep.subr.mxu0 0.0
          %409 = vmatpush1.msra.mxu0 0.0
          %410 = vmatprep.subr.mxu0 0.0
          %411 = vmatpush1.msra.mxu0 0.0
          %412 = vmatprep.subr.mxu0 0.0
          %413 = vmatpush1.msra.mxu0 0.0
          %414 = vmatprep.subr.mxu0 0.0
          %415 = vmatpush1.msra.mxu0 0.0
          %416 = vmatprep.subr.mxu0 0.0
          %417 = vmatpush1.msra.mxu0 0.0
          %418 = vmatprep.subr.mxu0 0.0
          %419 = vmatpush1.msra.mxu0 0.0
          %420 = vmatprep.subr.mxu0 0.0
          %421 = vmatpush1.msra.mxu0 0.0
          %422 = vmatprep.subr.mxu0 0.0
          %423 = vmatpush1.msra.mxu0 0.0
          %424 = vmatprep.subr.mxu0 0.0
          %425 = vmatpush1.msra.mxu0 0.0
          %426 = vmatprep.subr.mxu0 0.0
          %427 = vmatpush1.msra.mxu0 0.0
          %428 = vmatprep.subr.mxu0 0.0
          %429 = vmatpush1.msra.mxu0 0.0
          %430 = vmatprep.subr.mxu0 0.0
          %431 = vmatpush1.msra.mxu0 0.0
          %432 = vmatprep.subr.mxu0 0.0
          %433 = vmatpush1.msra.mxu0 0.0
          %434 = vmatprep.subr.mxu0 0.0
          %435 = vmatpush1.msra.mxu0 0.0
          %436 = vmatprep.subr.mxu0 0.0
          %437 = vmatpush1.msra.mxu0 0.0
          %438 = vmatprep.subr.mxu0 0.0
          %439 = vmatpush1.msra.mxu0 0.0
          %440 = vmatprep.subr.mxu0 0.0
          %441 = vmatpush1.msra.mxu0 0.0
          %442 = vmatprep.mubr.f32.mxu0 0.0
          %443 = vmatmul.mubr.f32.gmra.mrb[0].mxu0 %v376
          %v444 = vpop.f32.mrb[0].mxu0
          %v445 = vadd.f32 %v372, %v444
          %v446 = vpop.f32.mrb[0].mxu0
          %447 = vdwg.mxu0
          %v448 = vmul.f32 %v445, 0.5
          %v449 = vmul.f32 %v445, 0.70710677
          %v450 = verf.f32.pop %v449
          %v451 = vadd.f32 %v450, 1.0
          %v452 = vmul.f32 %v448, %v451
          %v453 = vsel %vm374, %v452, 0.0
          %454 = vadd.xlane.f32.xlu0 %v453
          %v455 = vpop.xlane.xlu0 %454
          %v456 = vrcp.pop 32.0
          %v457 = vmul.f32 %v455, %v456
          %v458 = vsub.f32 %v452, %v457
          %v459 = vmul.f32 %v458, %v458
          %v460 = vsel %vm374, %v459, 0.0
          %461 = vadd.xlane.f32.xlu0 %v460
          %v462 = vpop.xlane.xlu0 %461
          %v463 = vmul.f32 %v462, %v456
          %v464 = vadd.f32 %v463, 1e-12
          %v465 = vrsqrt.pop %v464
          %v466 = vmul.f32 %v458, %v465
          %v467 = vld [vmem:[%s3] sm:$0x1]
          %v469 = vlaneseq
          %v470 = vshrl.u32 %v469, 7
          %v471 = vsub.s32 0, %v470
          %v472 = vrot.slane %v467, %v471
          %v474 = vmul.f32 %v466, %v472
          %v475 = vld [vmem:[%s4] sm:$0x1]
          %v477 = vlaneseq
          %v478 = vshrl.u32 %v477, 7
          %v479 = vsub.s32 0, %v478
          %v480 = vrot.slane %v475, %v479
          %v482 = vadd.f32 %v474, %v480
          %483 = vst.msk [vmem:[#allocation2] sm:$0xff] %vm374, %v482
        $region64: #{tpu_custom_call.1} parent=47 // pred_fallthru
          _
        %v484 = vld [vmem:[#allocation2] sm:$0xff]
        %v485 = vld [vmem:[#allocation8] sm:$0xff]
        %v486 = vld [vmem:[#allocation8 + $0x8] sm:$0xff]
        %v487 = vld [vmem:[#allocation8 + $0x10] sm:$0xff]
        %v488 = vld [vmem:[#allocation8 + $0x18] sm:$0xff]
        %v489 = vld [vmem:[%s357] sm:$0x1]
        %v491 = vlaneseq
        %v492 = vshrl.u32 %v491, 7
        %v493 = vsub.s32 0, %v492
        %v494 = vrot.slane %v489, %v493
        %vm496 = vcmask 261120
        %v498 = vsel %vm496, %v484, 0
        %500 = vmatprep.subr.mxu0 0.0
        %501 = vmatpush1.msra.mxu0 %v485
        %502 = vmatprep.subr.mxu0 0.0
        %503 = vmatpush1.msra.mxu0 %v486
        %504 = vmatprep.subr.mxu0 0.0
        %505 = vmatpush1.msra.mxu0 %v487
        %506 = vmatprep.subr.mxu0 0.0
        %507 = vmatpush1.msra.mxu0 %v488
        %508 = vmatprep.subr.mxu0 0.0
        %509 = vmatpush1.msra.mxu0 0.0
        %510 = vmatprep.subr.mxu0 0.0
        %511 = vmatpush1.msra.mxu0 0.0
        %512 = vmatprep.subr.mxu0 0.0
        %513 = vmatpush1.msra.mxu0 0.0
        %514 = vmatprep.subr.mxu0 0.0
        %515 = vmatpush1.msra.mxu0 0.0
        %516 = vmatprep.subr.mxu0 0.0
        %517 = vmatpush1.msra.mxu0 0.0
        %518 = vmatprep.subr.mxu0 0.0
        %519 = vmatpush1.msra.mxu0 0.0
        %520 = vmatprep.subr.mxu0 0.0
        %521 = vmatpush1.msra.mxu0 0.0
        %522 = vmatprep.subr.mxu0 0.0
        %523 = vmatpush1.msra.mxu0 0.0
        %524 = vmatprep.subr.mxu0 0.0
        %525 = vmatpush1.msra.mxu0 0.0
        %526 = vmatprep.subr.mxu0 0.0
        %527 = vmatpush1.msra.mxu0 0.0
        %528 = vmatprep.subr.mxu0 0.0
        %529 = vmatpush1.msra.mxu0 0.0
        %530 = vmatprep.subr.mxu0 0.0
        %531 = vmatpush1.msra.mxu0 0.0
        %532 = vmatprep.subr.mxu0 0.0
        %533 = vmatpush1.msra.mxu0 0.0
        %534 = vmatprep.subr.mxu0 0.0
        %535 = vmatpush1.msra.mxu0 0.0
        %536 = vmatprep.subr.mxu0 0.0
        %537 = vmatpush1.msra.mxu0 0.0
        %538 = vmatprep.subr.mxu0 0.0
        %539 = vmatpush1.msra.mxu0 0.0
        %540 = vmatprep.subr.mxu0 0.0
        %541 = vmatpush1.msra.mxu0 0.0
        %542 = vmatprep.subr.mxu0 0.0
        %543 = vmatpush1.msra.mxu0 0.0
        %544 = vmatprep.subr.mxu0 0.0
        %545 = vmatpush1.msra.mxu0 0.0
        %546 = vmatprep.subr.mxu0 0.0
        %547 = vmatpush1.msra.mxu0 0.0
        %548 = vmatprep.subr.mxu0 0.0
        %549 = vmatpush1.msra.mxu0 0.0
        %550 = vmatprep.subr.mxu0 0.0
        %551 = vmatpush1.msra.mxu0 0.0
        %552 = vmatprep.subr.mxu0 0.0
        %553 = vmatpush1.msra.mxu0 0.0
        %554 = vmatprep.subr.mxu0 0.0
        %555 = vmatpush1.msra.mxu0 0.0
        %556 = vmatprep.subr.mxu0 0.0
        %557 = vmatpush1.msra.mxu0 0.0
        %558 = vmatprep.subr.mxu0 0.0
        %559 = vmatpush1.msra.mxu0 0.0
        %560 = vmatprep.subr.mxu0 0.0
        %561 = vmatpush1.msra.mxu0 0.0
        %562 = vmatprep.subr.mxu0 0.0
        %563 = vmatpush1.msra.mxu0 0.0
        %564 = vmatprep.mubr.f32.mxu0 0.0
        %565 = vmatmul.mubr.f32.gmra.mrb[0].mxu0 %v498
        %v566 = vpop.f32.mrb[0].mxu0
        %v567 = vadd.f32 %v494, %v566
        %v568 = vpop.f32.mrb[0].mxu0
        %569 = vdwg.mxu0
        %570 = vst [vmem:[%s354] sm:$0xff] %v567
        %s571 = sand.u32 %s209, 1
        %s572 = scalar_lea.sflag [#allocation5], %s571
        %s573 = sand.u32 %s209, 1
        %s574 = smul.addr %s573, 8
        %s575 = scalar_lea.vmem [#allocation9], %s574
        // Predicated region
        $region65: #{tpu_custom_call.1} parent=47 // pred_check
          %p576 = pneg %p219
        $region66: #{tpu_custom_call.1} parent=47 // pred_check_branch
          %578 = sbr.rel (%p576) target = $region68
        $region67: #{tpu_custom_call.1} parent=47 // pred_region
          %s580 = ssub.s32 128, 128
          %581 = vsyncadd %s572, %s580
          %s582 = sadd.s32 %s30, %s29
          %s583 = smul.addr %s582, 128
          %s584 = scalar_lea.hbm %s7, %s583
          %s586 = sshll.u32 %s575, 4
          %s587 = int_to_ptr.vmem [resolvable:$true] %s586
          %589 = dma.vmem_to_hbm [thread:$0]  %s587, 128, %s584, %s572
        $region68: #{tpu_custom_call.1} parent=47 // pred_fallthru
          _
      $region48: #{tpu_custom_call.1} parent=5 // pred_fallthru
        _
      %p590 = scmp.le.s32.totalorder 2, %s20
      // Predicated region
      $region69: #{tpu_custom_call.1} parent=5 // pred_check
        %p591 = pneg %p590
      $region70: #{tpu_custom_call.1} parent=5 // pred_check_branch
        %593 = sbr.rel (%p591) target = $region72
      $region71: #{tpu_custom_call.1} parent=5 // pred_region
        %s594 = ssub.s32 %s20, 2
        // Predicated region
        $region73: #{tpu_custom_call.1} parent=71 // pred_check
          %p595 = pneg %p225
        $region74: #{tpu_custom_call.1} parent=71 // pred_check_branch
          %597 = sbr.rel (%p595) target = $region76
        $region75: #{tpu_custom_call.1} parent=71 // pred_region
          %s598 = sand.u32 %s210, 1
          %s599 = scalar_lea.sflag [#allocation5], %s598
          %s600 = sand.u32 %s210, 1
          %s601 = smul.addr %s600, 8
          %s602 = scalar_lea.vmem [#allocation9], %s601
          %603 = dma.done %s599, 128
        $region76: #{tpu_custom_call.1} parent=71 // pred_fallthru
          _
      $region72: #{tpu_custom_call.1} parent=5 // pred_fallthru
        _
    $region6: #{tpu_custom_call.1} parent=1 // loop_footer
      %s24 = sadd.s32 1, %s20
    $region7: #{tpu_custom_call.1} parent=1 // loop_footer_branch
      %19 = sbr.rel target = $region3
    $region8: #{tpu_custom_call.1} parent=1 // loop_exit
      _
    %604 = vsyncpa [#allocation4], 1
    %s605 = scalar_lea.sflag [#allocation4], 1
    %606 = vsyncpa %s605, 1
    %607 = vsyncpa [#allocation7], 1
    %608 = vsyncpa [#allocation5], 1
    %s609 = scalar_lea.sflag [#allocation5], 1
    %610 = vsyncpa %s609, 1

</llo_original>
